<compile_context>
chip_gen: v7x
topology: tpu7x:2x2x1
jax: 0.10.0
libtpu: 0.0.40
codegen_flags: <defaults>
</compile_context>

<pallas_src>
import functools

import jax
import jax.numpy as jnp
from jax.experimental import pallas as pl
from jax.experimental.pallas import tpu as pltpu


def _mean_kernel(mask_ref, x_ref, out_ref, *, inv_m):
    """One grid step handles a tile of TN agents.

    mask_ref : (TN, K)  neighbor-summed adjacency rows for this agent tile
    x_ref    : (K, H)   all agents' hidden features (resident across tiles)
    out_ref  : (TN, H)  updated hidden features for this agent tile
    """
    acc = jnp.dot(mask_ref[...], x_ref[...],
                  preferred_element_type=jnp.float32)      # (TN, H) in f32
    out_ref[...] = (acc * inv_m).astype(out_ref.dtype)      # scale by 1/M on VPU


def mean_kernel_forward(x, mask, *, tile_n=None, compute_dtype=None):
    """Pallas implementation of MeanKernel.forward(x, mask).

    Args:
      x:    (n_agents_max, hidden_dim)               float32
      mask: (n_agents, max_neighbors, n_agents_max)  float32
      tile_n: agent tile size.  Default = n_agents (single grid step).  For
              large agent counts pass a multiple of 8 that divides n_agents.
      compute_dtype: optional MXU input dtype (e.g. jnp.bfloat16 on v6e/v7x);
              accumulation stays float32.
    Returns:
      (x_mean, None) where x_mean has shape (n_agents, hidden_dim), dtype of x.
    """
    n_agents, max_neighbors, n_agents_max = mask.shape
    kx, hidden_dim = x.shape
    assert kx == n_agents_max, "mask inner dim must match number of agents in x"

    if tile_n is None:
        tile_n = n_agents                       # grid=(1,): no per-step overhead
    assert n_agents % tile_n == 0, "n_agents must be divisible by tile_n"
    assert tile_n == n_agents or tile_n % 8 == 0, \
        "tiled path needs tile_n to be a multiple of 8 (sublane rule)"

    # Exploit linearity: sum the mask over the neighbor axis once in XLA.
    # This cuts mask DMA bytes and MXU work by max_neighbors.
    mask_sum = jnp.sum(mask, axis=1)            # (n_agents, n_agents_max)

    x_in = x
    if compute_dtype is not None:
        mask_sum = mask_sum.astype(compute_dtype)   # small ints: exact in bf16
        x_in = x.astype(compute_dtype)

    grid = (n_agents // tile_n,)
    kernel = functools.partial(_mean_kernel, inv_m=1.0 / float(max_neighbors))

    out = pl.pallas_call(
        kernel,
        out_shape=jax.ShapeDtypeStruct((n_agents, hidden_dim), x.dtype),
        grid_spec=pltpu.PrefetchScalarGridSpec(
            num_scalar_prefetch=0,
            grid=grid,
            in_specs=[
                # reduced mask: tile over the agent (row) axis
                pl.BlockSpec((tile_n, n_agents_max), lambda i: (i, 0)),
                # x: full feature matrix, resident for every grid step
                pl.BlockSpec((n_agents_max, hidden_dim), lambda i: (0, 0)),
            ],
            out_specs=pl.BlockSpec((tile_n, hidden_dim), lambda i: (i, 0)),
        ),
        compiler_params=pltpu.CompilerParams(
            dimension_semantics=("parallel",)),
    )(mask_sum, x_in)
    return out, None


def mean_kernel_ref(x, mask):
    """Pure-JAX reference mirroring the PyTorch forward exactly."""
    n_agents, max_neighbors, n_agents_max = mask.shape
    hidden_dim = x.shape[-1]
    feature_broadcast = jnp.broadcast_to(x, (n_agents, n_agents_max, hidden_dim))
    x_feats = jnp.einsum('bmk,bkh->bmh', mask, feature_broadcast)
    return jnp.mean(x_feats, axis=1), None


if __name__ == "__main__":
    # Small shapes consistent with the module:
    #   hidden_dim=128, n_agents (max) = 16, max_neighbors = 8
    hidden_dim = 128
    n_agents = 16
    max_neighbors = 8

    key = jax.random.PRNGKey(0)
    kx, km = jax.random.split(key)

    x = jax.random.normal(kx, (n_agents, hidden_dim), dtype=jnp.float32)
    # Adjacency-style mask: 0/1 entries.
    mask = jax.random.bernoulli(km, p=0.4,
                                shape=(n_agents, max_neighbors, n_agents)
                                ).astype(jnp.float32)

    ref, _ = mean_kernel_ref(x, mask)

    # Default path: f32 MXU inputs, single grid step.
    out, _ = mean_kernel_forward(x, mask)
    out = jax.block_until_ready(out)
    assert out.shape == (n_agents, hidden_dim)
    assert jnp.allclose(out, ref, atol=1e-5, rtol=1e-5), "mismatch vs reference (f32)"

    # Tiled path smoke test (exercises the multi-step grid / parallel sharding).
    out_tiled, _ = mean_kernel_forward(x, mask, tile_n=8)
    out_tiled = jax.block_until_ready(out_tiled)
    assert jnp.allclose(out_tiled, ref, atol=1e-5, rtol=1e-5), "mismatch vs reference (tiled)"

    # Optional bf16-MXU path (v6e/v7x full-rate MXU); looser tolerance for x cast.
    out_bf16, _ = mean_kernel_forward(x, mask, compute_dtype=jnp.bfloat16)
    out_bf16 = jax.block_until_ready(out_bf16)
    assert jnp.allclose(out_bf16, ref, atol=5e-2, rtol=5e-2), "mismatch vs reference (bf16)"

    print("KERNEL_OK")
</pallas_src>

<mosaic_0001>
module attributes {stable_mosaic.version = 11 : i64} {
  func.func @_mean_kernel(%arg0: i32, %arg1: memref<16x16xf32, #tpu.memory_space<vmem>>, %arg2: memref<16x128xf32, #tpu.memory_space<vmem>>, %arg3: memref<16x128xf32, #tpu.memory_space<vmem>>) attributes {dimension_semantics = [#tpu.dimension_semantics<parallel>], iteration_bounds = array<i64: 1>, scalar_prefetch = 0 : i64, scratch_operands = 0 : i64, tpu.core_type = #tpu.core_type<tc>, window_params = [{transform_indices = @transform_0, window_bounds = array<i64: 16, 16>}, {pipeline_mode = #tpu.pipeline_mode<synchronous>, transform_indices = @transform_1, window_bounds = array<i64: 16, 128>}, {transform_indices = @transform_2, window_bounds = array<i64: 16, 128>}]} {
    %c0 = arith.constant 0 : index
    %c0_0 = arith.constant 0 : index
    %0 = vector.load %arg1[%c0, %c0_0] : memref<16x16xf32, #tpu.memory_space<vmem>>, vector<16x16xf32>
    %c0_1 = arith.constant 0 : index
    %c0_2 = arith.constant 0 : index
    %1 = vector.load %arg2[%c0_1, %c0_2] : memref<16x128xf32, #tpu.memory_space<vmem>>, vector<16x128xf32>
    %cst = arith.constant dense<0.000000e+00> : vector<16x128xf32>
    %2 = tpu.matmul %0, %1, %cst {dimension_numbers = #tpu.dot_dimension_numbers<[1], [0], [0], [1], [0, 0, 1, 1], [], []>} : vector<16x16xf32>, vector<16x128xf32>, vector<16x128xf32> -> vector<16x128xf32>
    %cst_3 = arith.constant 1.250000e-01 : f32
    %3 = vector.broadcast %cst_3 : f32 to vector<16x128xf32>
    %4 = arith.mulf %2, %3 : vector<16x128xf32>
    %c0_4 = arith.constant 0 : index
    %c0_5 = arith.constant 0 : index
    %5 = vector.load %arg3[%c0_4, %c0_5] : memref<16x128xf32, #tpu.memory_space<vmem>>, vector<16x128xf32>
    tpu.vector_store %arg3[%c0_4, %c0_5], %4 {strides = array<i32>} : memref<16x128xf32, #tpu.memory_space<vmem>>, vector<16x128xf32>,
    return
  }
  func.func @transform_0(%arg0: i32) -> (i32, i32) {
    %c0_i32 = arith.constant 0 : i32
    %c0_i32_0 = arith.constant 0 : i32
    return %arg0, %c0_i32 : i32, i32
  }
  func.func @transform_1(%arg0: i32) -> (i32, i32) {
    %c0_i32 = arith.constant 0 : i32
    %c0_i32_0 = arith.constant 0 : i32
    %c0_i32_1 = arith.constant 0 : i32
    return %c0_i32, %c0_i32_0 : i32, i32
  }
  func.func @transform_2(%arg0: i32) -> (i32, i32) {
    %c0_i32 = arith.constant 0 : i32
    %c0_i32_0 = arith.constant 0 : i32
    return %arg0, %c0_i32 : i32, i32
  }
}

</mosaic_0001>

<llo_original>
// kernel: tpu_custom_call.1
$region0: #{tpu_custom_call.1}
  #allocation0 [shape = 'u32[]', space=smem, size = 0x4, offset = 0x4, fixed_abs, tag = 'smem constant byte address 0x4 - core index']
  #allocation1 [shape = 'u32[144,128]{1,0:T(1,128)}', space=vmem, size = 0x12000, scoped, tag = 'internal scratch']
  %s0 = inlined_call_operand.hbm [shape: f32[16,16], index: 0, kind: input, shape index: {}]
  %s1 = inlined_call_operand.hbm [shape: f32[16,128], index: 1, kind: input, shape index: {}]
  %s2 = inlined_call_operand.hbm [shape: f32[16,128], index: 2, kind: output, shape index: {}]
  %s3 = sld [smem:[#allocation0]]
  $region26: #{tpu_custom_call.1} parent=0
    _
  %s5 = ssub.s32 1, %s3
  %s6 = scalar_select 0, %s5, %s3
  $region1: #{tpu_custom_call.1} parent=0
    #allocation2 [shape = 'u8[8192]{0}', space=vmem, size = 0x2000, scoped, tag = 'input window, operand 0, single buffered']
    #allocation3 [shape = 's32[1]{0}', space=sflag, size = 0x4, scoped, tag = 'scoped memory for tpu_custom_call.1']
    #allocation4 [shape = 's32[1]{0}', space=sflag, size = 0x4, scoped, tag = 'scoped memory for tpu_custom_call.1']
    #allocation5 [shape = 'u8[8192]{0}', space=vmem, size = 0x2000, scoped, tag = 'input window, operand 1, single buffered']
    #allocation6 [shape = 's32[1]{0}', space=sflag, size = 0x4, scoped, tag = 'scoped memory for tpu_custom_call.1']
    #allocation7 [shape = 'u8[8192]{0}', space=vmem, size = 0x2000, scoped, tag = 'output window, operand 0, single buffered']
    %7 = vsyncpa [#allocation3], 0
    %8 = vsyncpa [#allocation6], 0
    %9 = vsyncpa [#allocation4], 0
    // Predicated region
    $region2: #{tpu_custom_call.1} parent=1 // pred_check
      _
    $region3: #{tpu_custom_call.1} parent=1 // pred_check_branch
      %11 = sbr.rel (0) target = $region5
    $region4: #{tpu_custom_call.1} parent=1 // pred_region
      %s13 = ssub.s32 256, 256
      %14 = vsyncadd [#allocation3], %s13
      %s15 = sshll.u32 [#allocation2], 4
      %s16 = int_to_ptr.vmem [resolvable:$true] %s15
      %21 = dma.hbm_to_vmem [thread:$0]  %s0, 256, %s16, [#allocation3], 128, 128, 8
    $region5: #{tpu_custom_call.1} parent=1 // pred_fallthru
      _
    // Predicated region
    $region6: #{tpu_custom_call.1} parent=1 // pred_check
      _
    $region7: #{tpu_custom_call.1} parent=1 // pred_check_branch
      %23 = sbr.rel (0) target = $region9
    $region8: #{tpu_custom_call.1} parent=1 // pred_region
      %s25 = ssub.s32 256, 256
      %26 = vsyncadd [#allocation6], %s25
      %s27 = sshll.u32 [#allocation5], 4
      %s28 = int_to_ptr.vmem [resolvable:$true] %s27
      %33 = dma.hbm_to_vmem [thread:$0]  %s1, 256, %s28, [#allocation6], 128, 128, 8
    $region9: #{tpu_custom_call.1} parent=1 // pred_fallthru
      _
    // Predicated region
    $region10: #{tpu_custom_call.1} parent=1 // pred_check
      _
    $region11: #{tpu_custom_call.1} parent=1 // pred_check_branch
      %35 = sbr.rel (0) target = $region13
    $region12: #{tpu_custom_call.1} parent=1 // pred_region
      %36 = dma.done [#allocation3], 256
    $region13: #{tpu_custom_call.1} parent=1 // pred_fallthru
      _
    // Predicated region
    $region14: #{tpu_custom_call.1} parent=1 // pred_check
      _
    $region15: #{tpu_custom_call.1} parent=1 // pred_check_branch
      %38 = sbr.rel (0) target = $region17
    $region16: #{tpu_custom_call.1} parent=1 // pred_region
      %39 = dma.done [#allocation6], 256
    $region17: #{tpu_custom_call.1} parent=1 // pred_fallthru
      _
    %v40 = vld [vmem:[#allocation2] sm:$0xff]
    %v41 = vld [vmem:[#allocation2 + $0x8] sm:$0xff]
    %v42 = vld [vmem:[#allocation5] sm:$0xff]
    %v43 = vld [vmem:[#allocation5 + $0x8] sm:$0xff]
    %vm44 = vcmask 130048
    %v46 = vsel %vm44, %v40, 0
    %v49 = vsel %vm44, %v41, 0
    %51 = vmatprep.subr.mxu0 0.0
    %52 = vmatpush1.msra.mxu0 %v42
    %53 = vmatprep.subr.mxu0 0.0
    %54 = vmatpush1.msra.mxu0 %v43
    %55 = vmatprep.subr.mxu0 0.0
    %56 = vmatpush1.msra.mxu0 0.0
    %57 = vmatprep.subr.mxu0 0.0
    %58 = vmatpush1.msra.mxu0 0.0
    %59 = vmatprep.subr.mxu0 0.0
    %60 = vmatpush1.msra.mxu0 0.0
    %61 = vmatprep.subr.mxu0 0.0
    %62 = vmatpush1.msra.mxu0 0.0
    %63 = vmatprep.subr.mxu0 0.0
    %64 = vmatpush1.msra.mxu0 0.0
    %65 = vmatprep.subr.mxu0 0.0
    %66 = vmatpush1.msra.mxu0 0.0
    %67 = vmatprep.subr.mxu0 0.0
    %68 = vmatpush1.msra.mxu0 0.0
    %69 = vmatprep.subr.mxu0 0.0
    %70 = vmatpush1.msra.mxu0 0.0
    %71 = vmatprep.subr.mxu0 0.0
    %72 = vmatpush1.msra.mxu0 0.0
    %73 = vmatprep.subr.mxu0 0.0
    %74 = vmatpush1.msra.mxu0 0.0
    %75 = vmatprep.subr.mxu0 0.0
    %76 = vmatpush1.msra.mxu0 0.0
    %77 = vmatprep.subr.mxu0 0.0
    %78 = vmatpush1.msra.mxu0 0.0
    %79 = vmatprep.subr.mxu0 0.0
    %80 = vmatpush1.msra.mxu0 0.0
    %81 = vmatprep.subr.mxu0 0.0
    %82 = vmatpush1.msra.mxu0 0.0
    %83 = vmatprep.subr.mxu0 0.0
    %84 = vmatpush1.msra.mxu0 0.0
    %85 = vmatprep.subr.mxu0 0.0
    %86 = vmatpush1.msra.mxu0 0.0
    %87 = vmatprep.subr.mxu0 0.0
    %88 = vmatpush1.msra.mxu0 0.0
    %89 = vmatprep.subr.mxu0 0.0
    %90 = vmatpush1.msra.mxu0 0.0
    %91 = vmatprep.subr.mxu0 0.0
    %92 = vmatpush1.msra.mxu0 0.0
    %93 = vmatprep.subr.mxu0 0.0
    %94 = vmatpush1.msra.mxu0 0.0
    %95 = vmatprep.subr.mxu0 0.0
    %96 = vmatpush1.msra.mxu0 0.0
    %97 = vmatprep.subr.mxu0 0.0
    %98 = vmatpush1.msra.mxu0 0.0
    %99 = vmatprep.subr.mxu0 0.0
    %100 = vmatpush1.msra.mxu0 0.0
    %101 = vmatprep.subr.mxu0 0.0
    %102 = vmatpush1.msra.mxu0 0.0
    %103 = vmatprep.subr.mxu0 0.0
    %104 = vmatpush1.msra.mxu0 0.0
    %105 = vmatprep.subr.mxu0 0.0
    %106 = vmatpush1.msra.mxu0 0.0
    %107 = vmatprep.subr.mxu0 0.0
    %108 = vmatpush1.msra.mxu0 0.0
    %109 = vmatprep.subr.mxu0 0.0
    %110 = vmatpush1.msra.mxu0 0.0
    %111 = vmatprep.subr.mxu0 0.0
    %112 = vmatpush1.msra.mxu0 0.0
    %113 = vmatprep.subr.mxu0 0.0
    %114 = vmatpush1.msra.mxu0 0.0
    %115 = vmatprep.mubr.f32.mxu0 0.0
    %116 = vmatmul.mubr.f32.gmra.mrb[0].mxu0 %v46
    %v117 = vpop.f32.mrb[0].mxu0
    %v118 = vadd.f32 0.0, %v117
    %v119 = vpop.f32.mrb[0].mxu0
    %120 = vmatprep.mubr.f32.mxu0 0.0
    %121 = vmatmul.mubr.f32.gmra.mrb[0].mxu0 %v49
    %v122 = vpop.f32.mrb[0].mxu0
    %v123 = vadd.f32 0.0, %v122
    %v124 = vpop.f32.mrb[0].mxu0
    %125 = vdwg.mxu0
    %v126 = vmul.f32 %v118, 0.125
    %v127 = vmul.f32 %v123, 0.125
    %128 = vst [vmem:[#allocation7] sm:$0xff] %v126
    %129 = vst [vmem:[#allocation7 + $0x8] sm:$0xff] %v127
    // Predicated region
    $region18: #{tpu_custom_call.1} parent=1 // pred_check
      _
    $region19: #{tpu_custom_call.1} parent=1 // pred_check_branch
      %131 = sbr.rel (0) target = $region21
    $region20: #{tpu_custom_call.1} parent=1 // pred_region
      %s133 = ssub.s32 256, 256
      %134 = vsyncadd [#allocation4], %s133
      %s135 = sshll.u32 [#allocation7], 4
      %s136 = int_to_ptr.vmem [resolvable:$true] %s135
      %141 = dma.vmem_to_hbm [thread:$0]  %s136, 256, %s2, [#allocation4], 128, 128, 8
    $region21: #{tpu_custom_call.1} parent=1 // pred_fallthru
      _
    // Predicated region
    $region22: #{tpu_custom_call.1} parent=1 // pred_check
      _
    $region23: #{tpu_custom_call.1} parent=1 // pred_check_branch
      %143 = sbr.rel (0) target = $region25
    $region24: #{tpu_custom_call.1} parent=1 // pred_region
      %144 = dma.done [#allocation4], 256
    $region25: #{tpu_custom_call.1} parent=1 // pred_fallthru
      _
    %145 = vsyncpa [#allocation3], 1
    %146 = vsyncpa [#allocation6], 1
    %147 = vsyncpa [#allocation4], 1

</llo_original>
